<compile_context>
chip_gen: v6e
topology: v6e:2x2x1
jax: 0.10.0
libtpu: 0.0.40
codegen_flags: <defaults>
</compile_context>

<pallas_src>
from collections import defaultdict
from functools import partial

import jax
import jax.numpy as jnp
from jax.experimental import pallas as pl
from jax.experimental.pallas import tpu as pltpu


def _round_up(x, m):
    return (x + m - 1) // m * m


def _cdiv(a, b):
    return -(-a // b)


def _up_conv_kernel(x_ref, w_ref, b_ref, o_ref, *, tap_offsets, l_out):
    """One batch element per grid step.

    x_ref: (1, Cin, Lin)        zero-padded input (compute dtype), spatial flattened on lanes
    w_ref: (4*Cout, U*Cin)      merged per-tap weights, taps stacked on K, phases on rows
    b_ref: (4*Cout, 1)          f32 bias replicated for the 4 output phases
    o_ref: (1, 4*Cout, Lout)    4 phase slabs, lane-dense (Lout multiple of 128)
    """
    cin = x_ref.shape[1]
    # K-stacked RHS: (U*Cin, Lout).  Each tap is a static lane slice of the flat input;
    # stacking on the sublane/K axis lets a single MXU contraction do all taps at once.
    rhs = jnp.concatenate(
        [x_ref[0, :, off:off + l_out] for off in tap_offsets], axis=0)
    assert rhs.shape == (len(tap_offsets) * cin, l_out)
    # One MXU contraction, f32 accumulation (MRF/MRB), instead of U tiny K=Cin dots.
    acc = jnp.dot(w_ref[...], rhs, preferred_element_type=jnp.float32)
    # Bias + ReLU once, in f32, on the lane-dense slab; fused into the single store.
    acc = jnp.maximum(acc + b_ref[...], 0.0)
    o_ref[0] = acc.astype(o_ref.dtype)


def up_conv_forward(x_nchw, weight_oihw, bias, *, dilation=1,
                    compute_dtype=jnp.bfloat16):
    """Forward pass of `up_conv` (inference).

    x_nchw:      (N, Cin, H, W)     NCHW input
    weight_oihw: (Cout, Cin, 3, 3)  Conv2d weight
    bias:        (Cout,)
    returns      (N, Cout, 2H, 2W)  == Upsample(2,'nearest') -> Conv2d -> ReLU (NCHW)
    """
    N, Cin, H, W = x_nchw.shape
    Cout = weight_oihw.shape[0]
    d = int(dilation)
    pad = (d + 1) // 2                   # max |row/col offset| at ORIGINAL resolution
    Wp = W + 2 * pad                     # flat row stride (right-only zero pad of 2*pad)
    head = pad + 1                       # top zero rows (>= pad, +1 keeps min offset >= 0)

    # ---- sub-pixel decomposition (trace time, tiny arrays) -----------------------------
    # Output pixel (2a+pi, 2b+pj) of conv(upsample(x)) only reads ORIGINAL pixels at
    # offsets (dr, dc) from (a, b); 3x3 taps aliasing the same original pixel are merged.
    tap_w = defaultdict(lambda: [None, None, None, None])   # (dr,dc) -> per-phase (Cout,Cin)
    for pi in (0, 1):
        for pj in (0, 1):
            ph = pi * 2 + pj
            for ky in range(3):
                for kx in range(3):
                    dr = (pi + (ky - 1) * d) // 2            # Python floor-div (handles <0)
                    dc = (pj + (kx - 1) * d) // 2
                    w_tap = weight_oihw[:, :, ky, kx]        # (Cout, Cin)
                    cur = tap_w[(dr, dc)][ph]
                    tap_w[(dr, dc)][ph] = w_tap if cur is None else cur + w_tap
    union = sorted(tap_w)                                    # deterministic tap order
    U = len(union)
    zeros_blk = jnp.zeros((Cout, Cin), weight_oihw.dtype)
    # (4*Cout, U*Cin): rows = phase-major output channels, columns = taps stacked on K
    # (column u*Cin + c multiplies input channel c of tap u, matching the kernel's concat).
    w_flat = jnp.concatenate(
        [jnp.concatenate([blk if blk is not None else zeros_blk for blk in tap_w[o]],
                         axis=0)
         for o in union],
        axis=1).astype(compute_dtype)
    tap_offsets = tuple((head + dr) * Wp + dc for (dr, dc) in union)   # all >= 0

    # ---- input: ONE pad producing the flat padded layout directly ----------------------
    # Flat layout: [head zero rows][row r: W values + 2*pad right zeros][bot zero rows],
    # so every out-of-bounds tap read lands on a zero and the reshape below is a bitcast.
    l_out = _round_up(H * Wp, 128)                           # lane-dense output slab length
    need = max(tap_offsets) + l_out                          # furthest lane the kernel reads
    bot = max(pad, _cdiv(need, Wp) - head - H)
    l_in = (head + H + bot) * Wp
    x_flat = jnp.pad(x_nchw.astype(compute_dtype),
                     ((0, 0), (0, 0), (head, bot), (0, 2 * pad))
                     ).reshape(N, Cin, l_in)                 # contiguous merge -> free

    b_all = jnp.tile(bias.astype(jnp.float32), 4).reshape(4 * Cout, 1)

    # ---- explicit VMEM budget from the actual (double-buffered) block sizes ------------
    cb = jnp.dtype(compute_dtype).itemsize
    ob = jnp.dtype(x_nchw.dtype).itemsize
    blk_bytes = (2 * Cin * l_in * cb                 # x block
                 + 2 * 4 * Cout * U * Cin * cb       # merged weights
                 + 2 * 4 * Cout * 4                  # bias (f32)
                 + 2 * 4 * Cout * l_out * ob)        # output block
    vmem_limit = int(min(48 << 20, max(16 << 20, 4 * blk_bytes + (4 << 20))))

    kernel = partial(_up_conv_kernel, tap_offsets=tap_offsets, l_out=l_out)

    out = pl.pallas_call(
        kernel,
        out_shape=jax.ShapeDtypeStruct((N, 4 * Cout, l_out), x_nchw.dtype),
        grid=(N,),
        in_specs=[
            pl.BlockSpec((1, Cin, l_in), lambda n: (n, 0, 0)),
            pl.BlockSpec((4 * Cout, U * Cin), lambda n: (0, 0)),
            pl.BlockSpec((4 * Cout, 1), lambda n: (0, 0)),
        ],
        out_specs=pl.BlockSpec((1, 4 * Cout, l_out), lambda n: (n, 0, 0)),
        compiler_params=pltpu.CompilerParams(
            dimension_semantics=("parallel",),
            vmem_limit_bytes=vmem_limit),
    )(x_flat, w_flat, b_all)

    # ---- interleave the 4 phase slabs back into NCHW (single XLA transpose, output) ----
    out = out[:, :, :H * Wp].reshape(N, 2, 2, Cout, H, Wp)[..., :W]   # drop garbage lanes
    out = out.transpose(0, 3, 4, 1, 5, 2).reshape(N, Cout, 2 * H, 2 * W)
    return out


if __name__ == "__main__":
    key = jax.random.PRNGKey(0)
    k1, k2, k3 = jax.random.split(key, 3)

    # Small shapes consistent with the module: ch_in=4, ch_out=8, batch=2, spatial=16.
    N, Cin, H, W = 2, 4, 16, 16
    Cout = 8

    x = jax.random.normal(k1, (N, Cin, H, W), dtype=jnp.float32)
    weight = jax.random.normal(k2, (Cout, Cin, 3, 3), dtype=jnp.float32) * 0.1
    bias = jax.random.normal(k3, (Cout,), dtype=jnp.float32) * 0.1

    # Pure-JAX reference (module semantics, f32): upsample -> conv(pad=1) -> bias -> ReLU.
    x_up_ref = jnp.repeat(jnp.repeat(x, 2, axis=2), 2, axis=3)
    ref = jax.lax.conv_general_dilated(
        x_up_ref, weight,
        window_strides=(1, 1),
        padding=((1, 1), (1, 1)),
        rhs_dilation=(1, 1),
        dimension_numbers=("NCHW", "OIHW", "NCHW"),
        precision=jax.lax.Precision.HIGHEST,
    )
    ref = jnp.maximum(ref + bias[None, :, None, None], 0.0)

    # Exact path (f32 compute) -- tight check of the indexing / decomposition.
    out_f32 = jax.block_until_ready(
        up_conv_forward(x, weight, bias, dilation=1, compute_dtype=jnp.float32))
    assert out_f32.shape == (N, Cout, 2 * H, 2 * W), out_f32.shape
    assert jnp.allclose(out_f32, ref, atol=1e-3, rtol=1e-3), \
        float(jnp.max(jnp.abs(out_f32 - ref)))

    # Fast path (default: bf16 MXU compute, f32 accumulation) -- bf16-level tolerance.
    out = jax.block_until_ready(up_conv_forward(x, weight, bias, dilation=1))
    assert out.shape == (N, Cout, 2 * H, 2 * W), out.shape
    assert jnp.allclose(out, ref, atol=5e-2, rtol=5e-2), \
        float(jnp.max(jnp.abs(out - ref)))

    print("KERNEL_OK")
</pallas_src>

<mosaic_0001>
module attributes {stable_mosaic.version = 11 : i64} {
  func.func @_up_conv_kernel(%arg0: i32, %arg1: memref<1x4x450xf32, #tpu.memory_space<vmem>>, %arg2: memref<32x36xf32, #tpu.memory_space<vmem>>, %arg3: memref<32x1xf32, #tpu.memory_space<vmem>>, %arg4: memref<1x32x384xf32, #tpu.memory_space<vmem>>) attributes {dimension_semantics = [#tpu.dimension_semantics<parallel>], iteration_bounds = array<i64: 2>, scalar_prefetch = 0 : i64, scratch_operands = 0 : i64, tpu.core_type = #tpu.core_type<tc>, window_params = [{transform_indices = @transform_0, window_bounds = array<i64: 1, 4, 450>}, {pipeline_mode = #tpu.pipeline_mode<synchronous>, transform_indices = @transform_1, window_bounds = array<i64: 32, 36>}, {pipeline_mode = #tpu.pipeline_mode<synchronous>, transform_indices = @transform_2, window_bounds = array<i64: 32, 1>}, {transform_indices = @transform_3, window_bounds = array<i64: 1, 32, 384>}]} {
    %c0 = arith.constant 0 : index
    %c0_0 = arith.constant 0 : index
    %c17 = arith.constant 17 : index
    %0 = vector.load %arg1[%c0, %c0_0, %c17] : memref<1x4x450xf32, #tpu.memory_space<vmem>>, vector<1x4x384xf32>
    %1 = vector.shape_cast %0 : vector<1x4x384xf32> to vector<4x384xf32>
    %c0_1 = arith.constant 0 : index
    %c0_2 = arith.constant 0 : index
    %c18 = arith.constant 18 : index
    %2 = vector.load %arg1[%c0_1, %c0_2, %c18] : memref<1x4x450xf32, #tpu.memory_space<vmem>>, vector<1x4x384xf32>
    %3 = vector.shape_cast %2 : vector<1x4x384xf32> to vector<4x384xf32>
    %c0_3 = arith.constant 0 : index
    %c0_4 = arith.constant 0 : index
    %c19 = arith.constant 19 : index
    %4 = vector.load %arg1[%c0_3, %c0_4, %c19] : memref<1x4x450xf32, #tpu.memory_space<vmem>>, vector<1x4x384xf32>
    %5 = vector.shape_cast %4 : vector<1x4x384xf32> to vector<4x384xf32>
    %c0_5 = arith.constant 0 : index
    %c0_6 = arith.constant 0 : index
    %c35 = arith.constant 35 : index
    %6 = vector.load %arg1[%c0_5, %c0_6, %c35] : memref<1x4x450xf32, #tpu.memory_space<vmem>>, vector<1x4x384xf32>
    %7 = vector.shape_cast %6 : vector<1x4x384xf32> to vector<4x384xf32>
    %c0_7 = arith.constant 0 : index
    %c0_8 = arith.constant 0 : index
    %c36 = arith.constant 36 : index
    %8 = vector.load %arg1[%c0_7, %c0_8, %c36] : memref<1x4x450xf32, #tpu.memory_space<vmem>>, vector<1x4x384xf32>
    %9 = vector.shape_cast %8 : vector<1x4x384xf32> to vector<4x384xf32>
    %c0_9 = arith.constant 0 : index
    %c0_10 = arith.constant 0 : index
    %c37 = arith.constant 37 : index
    %10 = vector.load %arg1[%c0_9, %c0_10, %c37] : memref<1x4x450xf32, #tpu.memory_space<vmem>>, vector<1x4x384xf32>
    %11 = vector.shape_cast %10 : vector<1x4x384xf32> to vector<4x384xf32>
    %c0_11 = arith.constant 0 : index
    %c0_12 = arith.constant 0 : index
    %c53 = arith.constant 53 : index
    %12 = vector.load %arg1[%c0_11, %c0_12, %c53] : memref<1x4x450xf32, #tpu.memory_space<vmem>>, vector<1x4x384xf32>
    %13 = vector.shape_cast %12 : vector<1x4x384xf32> to vector<4x384xf32>
    %c0_13 = arith.constant 0 : index
    %c0_14 = arith.constant 0 : index
    %c54 = arith.constant 54 : index
    %14 = vector.load %arg1[%c0_13, %c0_14, %c54] : memref<1x4x450xf32, #tpu.memory_space<vmem>>, vector<1x4x384xf32>
    %15 = vector.shape_cast %14 : vector<1x4x384xf32> to vector<4x384xf32>
    %c0_15 = arith.constant 0 : index
    %c0_16 = arith.constant 0 : index
    %c55 = arith.constant 55 : index
    %16 = vector.load %arg1[%c0_15, %c0_16, %c55] : memref<1x4x450xf32, #tpu.memory_space<vmem>>, vector<1x4x384xf32>
    %17 = vector.shape_cast %16 : vector<1x4x384xf32> to vector<4x384xf32>
    %18 = tpu.concatenate %1, %3, %5, %7, %9, %11, %13, %15, %17 in 0 : vector<4x384xf32>, vector<4x384xf32>, vector<4x384xf32>, vector<4x384xf32>, vector<4x384xf32>, vector<4x384xf32>, vector<4x384xf32>, vector<4x384xf32>, vector<4x384xf32> -> vector<36x384xf32>
    %c0_17 = arith.constant 0 : index
    %c0_18 = arith.constant 0 : index
    %19 = vector.load %arg2[%c0_17, %c0_18] : memref<32x36xf32, #tpu.memory_space<vmem>>, vector<32x36xf32>
    %cst = arith.constant dense<0.000000e+00> : vector<32x384xf32>
    %20 = tpu.matmul %19, %18, %cst {dimension_numbers = #tpu.dot_dimension_numbers<[1], [0], [0], [1], [0, 0, 1, 1], [], []>} : vector<32x36xf32>, vector<36x384xf32>, vector<32x384xf32> -> vector<32x384xf32>
    %c0_19 = arith.constant 0 : index
    %c0_20 = arith.constant 0 : index
    %21 = vector.load %arg3[%c0_19, %c0_20] : memref<32x1xf32, #tpu.memory_space<vmem>>, vector<32x1xf32>
    %22 = vector.broadcast %21 : vector<32x1xf32> to vector<32x384xf32>
    %23 = arith.addf %20, %22 : vector<32x384xf32>
    %cst_21 = arith.constant 0.000000e+00 : f32
    %24 = vector.broadcast %cst_21 : f32 to vector<32x384xf32>
    %25 = arith.maximumf %23, %24 : vector<32x384xf32>
    %c0_22 = arith.constant 0 : index
    %c0_23 = arith.constant 0 : index
    %c0_24 = arith.constant 0 : index
    %26 = vector.load %arg4[%c0_22, %c0_23, %c0_24] : memref<1x32x384xf32, #tpu.memory_space<vmem>>, vector<1x32x384xf32>
    %27 = vector.shape_cast %26 : vector<1x32x384xf32> to vector<32x384xf32>
    %28 = vector.shape_cast %25 : vector<32x384xf32> to vector<1x32x384xf32>
    tpu.vector_store %arg4[%c0_22, %c0_23, %c0_24], %28 {strides = array<i32>} : memref<1x32x384xf32, #tpu.memory_space<vmem>>, vector<1x32x384xf32>,
    return
  }
  func.func @transform_0(%arg0: i32) -> (i32, i32, i32) {
    %c0_i32 = arith.constant 0 : i32
    %c0_i32_0 = arith.constant 0 : i32
    %c0_i32_1 = arith.constant 0 : i32
    return %arg0, %c0_i32, %c0_i32_0 : i32, i32, i32
  }
  func.func @transform_1(%arg0: i32) -> (i32, i32) {
    %c0_i32 = arith.constant 0 : i32
    %c0_i32_0 = arith.constant 0 : i32
    %c0_i32_1 = arith.constant 0 : i32
    return %c0_i32, %c0_i32_0 : i32, i32
  }
  func.func @transform_2(%arg0: i32) -> (i32, i32) {
    %c0_i32 = arith.constant 0 : i32
    %c0_i32_0 = arith.constant 0 : i32
    %c0_i32_1 = arith.constant 0 : i32
    return %c0_i32, %c0_i32_0 : i32, i32
  }
  func.func @transform_3(%arg0: i32) -> (i32, i32, i32) {
    %c0_i32 = arith.constant 0 : i32
    %c0_i32_0 = arith.constant 0 : i32
    %c0_i32_1 = arith.constant 0 : i32
    return %arg0, %c0_i32, %c0_i32_0 : i32, i32, i32
  }
}

</mosaic_0001>

<llo_original>
// kernel: tpu_custom_call.1
$region0: #{tpu_custom_call.1}
  #allocation0 [shape = 'u32[]', space=smem, size = 0x4, offset = 0x4, fixed_abs, tag = 'smem constant byte address 0x4 - core index']
  #allocation1 [shape = 'u32[144,128]{1,0:T(1,128)}', space=vmem, size = 0x12000, scoped, tag = 'internal scratch']
  %s0 = inlined_call_operand.vmem [shape: f32[2,4,450], index: 0, kind: input, shape index: {}]
  %s1 = inlined_call_operand.hbm [shape: f32[32,36], index: 1, kind: input, shape index: {}]
  %s2 = inlined_call_operand.vmem [shape: f32[32,1], index: 2, kind: input, shape index: {}]
  %s3 = inlined_call_operand.hbm [shape: f32[2,32,384], index: 3, kind: output, shape index: {}]
  %s4 = sld [smem:[#allocation0]]
  $region49: #{tpu_custom_call.1} parent=0
    _
  %s6 = ssub.s32 1, %s4
  %s7 = scalar_select 0, %s6, %s4
  $region1: #{tpu_custom_call.1} parent=0
    #allocation2 [shape = 'u8[16384]{0}', space=vmem, size = 0x4000, scoped, tag = 'input window, operand 1, single buffered']
    #allocation3 [shape = 's32[2]{0}', space=sflag, size = 0x8, scoped, tag = 'scoped memory for tpu_custom_call.1']
    #allocation4 [shape = 's32[2]{0}', space=sflag, size = 0x8, scoped, tag = 'scoped memory for tpu_custom_call.1']
    #allocation5 [shape = 'u8[98304]{0}', space=vmem, size = 0x18000, scoped, tag = 'output window, operand 0']
    %8 = vsyncpa [#allocation3], 0
    %9 = vsyncpa [#allocation4], 0
    %s10 = scalar_lea.sflag [#allocation4], 1
    %11 = vsyncpa %s10, 0
    loop: start=0, step=1, limit=4
    $region2: #{tpu_custom_call.1} parent=1 // loop_pre_header
      _
    $region3: #{tpu_custom_call.1} parent=1 // loop_header
      %s13 = sphi 0, %s17
      %p14 = scmp.ge.s32.totalorder %s13, 4
      %s23 = sphi 0, %s25
      %s26 = sphi 0, %s23
      %s27 = sphi 0, %s26
      %s43 = sphi 0, %s27
      %s47 = sphi 0, %s47
      %s49 = sphi 0, %s47
      %s50 = sphi 0, %s49
      %s64 = sphi 0, %s50
      %s68 = sphi 0, %s68
      %s70 = sphi 0, %s68
      %s71 = sphi 0, %s70
      %s85 = sphi 0, %s71
      %s91 = sphi 0, %s93
      %s94 = sphi 0, %s91
      %s95 = sphi 0, %s94
      %s111 = sphi 0, %s95
    $region4: #{tpu_custom_call.1} parent=1 // loop_header_branch
      %16 = sbr.rel (%p14) target = $region8
    $region5: #{tpu_custom_call.1} parent=1 // loop_body
      %s18 = ssub.s32 %s13, 1
      %s19 = ssub.s32 %s13, 2
      %s20 = sadd.s32 %s13, 1
      %s21 = ssub.s32 %s13, %s20
      %p22 = scmp.eq.s32.totalorder %s21, 0
      %s24 = sadd.s32 %s23, 1
      %s25 = scalar_select %p22, %s23, %s24
      %p28 = pneg %p22
      %p29 = scmp.eq.s32.totalorder %s13, 1
      %p30 = por %p28, %p29
      %p31 = scmp.ne.s32.totalorder %s23, %s26
      %p32 = scmp.eq.s32.totalorder %s13, 0
      %p33 = por %p31, %p32
      %p34 = scmp.ne.s32.totalorder %s23, %s26
      %p35 = scmp.eq.s32.totalorder %s18, 1
      %p36 = por %p34, %p35
      %p37 = scmp.ne.s32.totalorder %s26, %s27
      %p38 = scmp.eq.s32.totalorder %s18, 0
      %p39 = por %p37, %p38
      %p40 = scmp.ne.s32.totalorder %s26, %s27
      %p41 = scmp.eq.s32.totalorder %s19, 1
      %p42 = por %p40, %p41
      %p44 = scmp.ne.s32.totalorder %s27, %s43
      %p45 = scmp.eq.s32.totalorder %s19, 0
      %p46 = por %p44, %p45
      %s48 = sadd.s32 %s47, 1
      %p51 = scmp.eq.s32.totalorder %s13, 1
      %p52 = scmp.ne.s32.totalorder %s47, %s49
      %p53 = scmp.eq.s32.totalorder %s13, 0
      %p54 = por %p52, %p53
      %p55 = scmp.ne.s32.totalorder %s47, %s49
      %p56 = scmp.eq.s32.totalorder %s18, 1
      %p57 = por %p55, %p56
      %p58 = scmp.ne.s32.totalorder %s49, %s50
      %p59 = scmp.eq.s32.totalorder %s18, 0
      %p60 = por %p58, %p59
      %p61 = scmp.ne.s32.totalorder %s49, %s50
      %p62 = scmp.eq.s32.totalorder %s19, 1
      %p63 = por %p61, %p62
      %p65 = scmp.ne.s32.totalorder %s50, %s64
      %p66 = scmp.eq.s32.totalorder %s19, 0
      %p67 = por %p65, %p66
      %s69 = sadd.s32 %s68, 1
      %p72 = scmp.eq.s32.totalorder %s13, 1
      %p73 = scmp.ne.s32.totalorder %s68, %s70
      %p74 = scmp.eq.s32.totalorder %s13, 0
      %p75 = por %p73, %p74
      %p76 = scmp.ne.s32.totalorder %s68, %s70
      %p77 = scmp.eq.s32.totalorder %s18, 1
      %p78 = por %p76, %p77
      %p79 = scmp.ne.s32.totalorder %s70, %s71
      %p80 = scmp.eq.s32.totalorder %s18, 0
      %p81 = por %p79, %p80
      %p82 = scmp.ne.s32.totalorder %s70, %s71
      %p83 = scmp.eq.s32.totalorder %s19, 1
      %p84 = por %p82, %p83
      %p86 = scmp.ne.s32.totalorder %s71, %s85
      %p87 = scmp.eq.s32.totalorder %s19, 0
      %p88 = por %p86, %p87
      %s89 = ssub.s32 %s13, %s20
      %p90 = scmp.eq.s32.totalorder %s89, 0
      %s92 = sadd.s32 %s91, 1
      %s93 = scalar_select %p90, %s91, %s92
      %p96 = pneg %p90
      %p97 = scmp.eq.s32.totalorder %s13, 1
      %p98 = por %p96, %p97
      %p99 = scmp.ne.s32.totalorder %s91, %s94
      %p100 = scmp.eq.s32.totalorder %s13, 0
      %p101 = por %p99, %p100
      %p102 = scmp.ne.s32.totalorder %s91, %s94
      %p103 = scmp.eq.s32.totalorder %s18, 1
      %p104 = por %p102, %p103
      %p105 = scmp.ne.s32.totalorder %s94, %s95
      %p106 = scmp.eq.s32.totalorder %s18, 0
      %p107 = por %p105, %p106
      %p108 = scmp.ne.s32.totalorder %s94, %s95
      %p109 = scmp.eq.s32.totalorder %s19, 1
      %p110 = por %p108, %p109
      %p112 = scmp.ne.s32.totalorder %s95, %s111
      %p113 = scmp.eq.s32.totalorder %s19, 0
      %p114 = por %p112, %p113
      %p115 = scmp.le.s32.totalorder 1, %s13
      %p116 = scmp.lt.s32.totalorder %s13, 3
      %p117 = pnand %p115, %p116
      %p118 = pneg %p117
      // Predicated region
      $region9: #{tpu_custom_call.1} parent=5 // pred_check
        _
      $region10: #{tpu_custom_call.1} parent=5 // pred_check_branch
        %120 = sbr.rel (%p117) target = $region12
      $region11: #{tpu_custom_call.1} parent=5 // pred_region
        %s121 = ssub.s32 %s13, 1
        // Predicated region
        $region13: #{tpu_custom_call.1} parent=11 // pred_check
          %p122 = pneg %p60
        $region14: #{tpu_custom_call.1} parent=11 // pred_check_branch
          %124 = sbr.rel (%p122) target = $region16
        $region15: #{tpu_custom_call.1} parent=11 // pred_region
          %s126 = ssub.s32 512, 512
          %127 = vsyncadd [#allocation3], %s126
          %s128 = sshll.u32 [#allocation2], 4
          %s129 = int_to_ptr.vmem [resolvable:$true] %s128
          %134 = dma.hbm_to_vmem [thread:$0]  %s1, 512, %s129, [#allocation3], 128, 128, 8
        $region16: #{tpu_custom_call.1} parent=11 // pred_fallthru
          _
        // Predicated region
        $region17: #{tpu_custom_call.1} parent=11 // pred_check
          %p135 = pneg %p81
        $region18: #{tpu_custom_call.1} parent=11 // pred_check_branch
          %137 = sbr.rel (%p135) target = $region20
        $region19: #{tpu_custom_call.1} parent=11 // pred_region
          _
        $region20: #{tpu_custom_call.1} parent=11 // pred_fallthru
          _
      $region12: #{tpu_custom_call.1} parent=5 // pred_fallthru
        _
      %p138 = scmp.lt.s32.totalorder %s13, 2
      // Predicated region
      $region21: #{tpu_custom_call.1} parent=5 // pred_check
        %p139 = pneg %p138
      $region22: #{tpu_custom_call.1} parent=5 // pred_check_branch
        %141 = sbr.rel (%p139) target = $region24
      $region23: #{tpu_custom_call.1} parent=5 // pred_region
        // Predicated region
        $region25: #{tpu_custom_call.1} parent=23 // pred_check
          %p142 = pneg %p33
        $region26: #{tpu_custom_call.1} parent=23 // pred_check_branch
          %144 = sbr.rel (%p142) target = $region28
        $region27: #{tpu_custom_call.1} parent=23 // pred_region
          %p145 = scmp.lt.s32.totalorder %s13, 1
          %s146 = scalar_select %p145, %s13, 1
          %s147 = smul.addr %s146, 4
          %s148 = smul.addr %s147, 4
          %s149 = scalar_lea.vmem %s0, %s148
        $region28: #{tpu_custom_call.1} parent=23 // pred_fallthru
          _
      $region24: #{tpu_custom_call.1} parent=5 // pred_fallthru
        _
      %p150 = scmp.le.s32.totalorder 1, %s13
      %p151 = scmp.lt.s32.totalorder %s13, 3
      %p152 = pnand %p150, %p151
      %p153 = pneg %p152
      // Predicated region
      $region29: #{tpu_custom_call.1} parent=5 // pred_check
        _
      $region30: #{tpu_custom_call.1} parent=5 // pred_check_branch
        %155 = sbr.rel (%p152) target = $region32
      $region31: #{tpu_custom_call.1} parent=5 // pred_region
        %s156 = ssub.s32 %s13, 1
        // Predicated region
        $region33: #{tpu_custom_call.1} parent=31 // pred_check
          %p157 = pneg %p60
        $region34: #{tpu_custom_call.1} parent=31 // pred_check_branch
          %159 = sbr.rel (%p157) target = $region36
        $region35: #{tpu_custom_call.1} parent=31 // pred_region
          %160 = dma.done [#allocation3], 512
        $region36: #{tpu_custom_call.1} parent=31 // pred_fallthru
          _
        %p161 = scmp.lt.s32.totalorder %s18, 1
        %s162 = scalar_select %p161, %s18, 1
        %s163 = smul.addr %s162, 4
        %s164 = smul.addr %s163, 4
        %s165 = scalar_lea.vmem %s0, %s164
        %p166 = pneg %p39
        %p167 = pneg %p36
        %p168 = pneg %p60
        %p169 = pneg %p57
        %p170 = pneg %p81
        %p171 = pneg %p78
        %p172 = pneg %p107
        %p173 = pneg %p104
        %s174 = sand.u32 %s94, 1
        %s175 = scalar_lea.sflag [#allocation4], %s174
        %s176 = sand.u32 %s94, 1
        %s177 = smul.addr %s176, 96
        %s178 = scalar_lea.vmem [#allocation5], %s177
        %p179 = scmp.lt.s32.totalorder %s18, 1
        %s180 = scalar_select %p179, %s18, 1
        %s181 = smul.addr %s180, 4
        %s182 = smul.addr %s181, 4
        %s183 = scalar_lea.vmem %s0, %s182
        %v184 = vld [vmem:[%s183] sm:$0xff]
        %v185 = vld [vmem:[%s183 + $0x8] sm:$0xff]
        %v188 = vcombine.high %v184, %v184
        %v189 = vcombine.high %v185, %v185
        %v192 = vcombine.low %v184, %v184
        %v193 = vcombine.low %v185, %v185
        %194 = vrot.lane.b32.xlu0 %v192, 127
        %v195 = vpop.permute.xlu0 %194
        %196 = vrot.lane.b32.xlu0 %v184, 127
        %v197 = vpop.permute.xlu0 %196
        %198 = vrot.lane.b32.xlu0 %v193, 127
        %v199 = vpop.permute.xlu0 %198
        %200 = vrot.lane.b32.xlu0 %v185, 127
        %v201 = vpop.permute.xlu0 %200
        %vm202 = vcmask 1039360
        %v203 = vsel %vm202, %v195, %v197
        %v204 = vsel %vm202, %v197, %v199
        %v205 = vsel %vm202, %v199, %v201
        %210 = vrot.lane.b32.xlu0 %v184, 126
        %v211 = vpop.permute.xlu0 %210
        %212 = vrot.lane.b32.xlu0 %v188, 126
        %v213 = vpop.permute.xlu0 %212
        %214 = vrot.lane.b32.xlu0 %v185, 126
        %v215 = vpop.permute.xlu0 %214
        %216 = vrot.lane.b32.xlu0 %v189, 126
        %v217 = vpop.permute.xlu0 %216
        %vm218 = vcmask 1031168
        %v219 = vsel %vm218, %v211, %v213
        %v220 = vsel %vm218, %v213, %v215
        %v221 = vsel %vm218, %v215, %v217
        %226 = vrot.lane.b32.xlu0 %v192, 110
        %v227 = vpop.permute.xlu0 %226
        %228 = vrot.lane.b32.xlu0 %v184, 110
        %v229 = vpop.permute.xlu0 %228
        %230 = vrot.lane.b32.xlu0 %v193, 110
        %v231 = vpop.permute.xlu0 %230
        %232 = vrot.lane.b32.xlu0 %v185, 110
        %v233 = vpop.permute.xlu0 %232
        %vm234 = vcmask 900096
        %v235 = vsel %vm234, %v227, %v229
        %v236 = vsel %vm234, %v229, %v231
        %v237 = vsel %vm234, %v231, %v233
        %242 = vrot.lane.b32.xlu0 %v184, 109
        %v243 = vpop.permute.xlu0 %242
        %244 = vrot.lane.b32.xlu0 %v188, 109
        %v245 = vpop.permute.xlu0 %244
        %246 = vrot.lane.b32.xlu0 %v185, 109
        %v247 = vpop.permute.xlu0 %246
        %248 = vrot.lane.b32.xlu0 %v189, 109
        %v249 = vpop.permute.xlu0 %248
        %vm250 = vcmask 891904
        %v251 = vsel %vm250, %v243, %v245
        %v252 = vsel %vm250, %v245, %v247
        %v253 = vsel %vm250, %v247, %v249
        %258 = vrot.lane.b32.xlu0 %v192, 108
        %v259 = vpop.permute.xlu0 %258
        %260 = vrot.lane.b32.xlu0 %v184, 108
        %v261 = vpop.permute.xlu0 %260
        %262 = vrot.lane.b32.xlu0 %v193, 108
        %v263 = vpop.permute.xlu0 %262
        %264 = vrot.lane.b32.xlu0 %v185, 108
        %v265 = vpop.permute.xlu0 %264
        %vm266 = vcmask 883712
        %v267 = vsel %vm266, %v259, %v261
        %v268 = vsel %vm266, %v261, %v263
        %v269 = vsel %vm266, %v263, %v265
        %274 = vrot.lane.b32.xlu0 %v184, 92
        %v275 = vpop.permute.xlu0 %274
        %276 = vrot.lane.b32.xlu0 %v188, 92
        %v277 = vpop.permute.xlu0 %276
        %278 = vrot.lane.b32.xlu0 %v185, 92
        %v279 = vpop.permute.xlu0 %278
        %280 = vrot.lane.b32.xlu0 %v189, 92
        %v281 = vpop.permute.xlu0 %280
        %vm282 = vcmask 752640
        %v283 = vsel %vm282, %v275, %v277
        %v284 = vsel %vm282, %v277, %v279
        %v285 = vsel %vm282, %v279, %v281
        %290 = vrot.lane.b32.xlu0 %v192, 91
        %v291 = vpop.permute.xlu0 %290
        %292 = vrot.lane.b32.xlu0 %v184, 91
        %v293 = vpop.permute.xlu0 %292
        %294 = vrot.lane.b32.xlu0 %v193, 91
        %v295 = vpop.permute.xlu0 %294
        %296 = vrot.lane.b32.xlu0 %v185, 91
        %v297 = vpop.permute.xlu0 %296
        %vm298 = vcmask 744448
        %v299 = vsel %vm298, %v291, %v293
        %v300 = vsel %vm298, %v293, %v295
        %v301 = vsel %vm298, %v295, %v297
        %306 = vrot.lane.b32.xlu0 %v184, 90
        %v307 = vpop.permute.xlu0 %306
        %308 = vrot.lane.b32.xlu0 %v188, 90
        %v309 = vpop.permute.xlu0 %308
        %310 = vrot.lane.b32.xlu0 %v185, 90
        %v311 = vpop.permute.xlu0 %310
        %312 = vrot.lane.b32.xlu0 %v189, 90
        %v313 = vpop.permute.xlu0 %312
        %vm314 = vcmask 736256
        %v315 = vsel %vm314, %v307, %v309
        %v316 = vsel %vm314, %v309, %v311
        %v317 = vsel %vm314, %v311, %v313
        %vm318 = vcmask 1043456
        %v319 = vsel %vm318, %v184, %v203
        %v320 = vsel %vm318, %v188, %v204
        %v321 = vsel %vm318, %v185, %v205
        %v322 = vsel %vm318, %v189, %v201
        %v323 = vsel %vm318, %v219, %v235
        %v324 = vsel %vm318, %v220, %v236
        %v325 = vsel %vm318, %v221, %v237
        %v326 = vsel %vm318, %v217, %v233
        %v327 = vsel %vm318, %v251, %v267
        %v328 = vsel %vm318, %v252, %v268
        %v329 = vsel %vm318, %v253, %v269
        %v330 = vsel %vm318, %v249, %v265
        %v331 = vsel %vm318, %v283, %v299
        %v332 = vsel %vm318, %v284, %v300
        %v333 = vsel %vm318, %v285, %v301
        %v334 = vsel %vm318, %v281, %v297
        %v335 = vld [vmem:[#allocation2] sm:$0xff]
        %v336 = vld [vmem:[#allocation2 + $0x8] sm:$0xff]
        %v337 = vld [vmem:[#allocation2 + $0x10] sm:$0xff]
        %v338 = vld [vmem:[#allocation2 + $0x18] sm:$0xff]
        %v339 = vld [vmem:[%s2] sm:$0xff]
        %v340 = vld [vmem:[%s2 + $0x8] sm:$0xff]
        %v341 = vld [vmem:[%s2 + $0x10] sm:$0xff]
        %v342 = vld [vmem:[%s2 + $0x18] sm:$0xff]
        %344 = vset.pattern.permute.xlu0 0
        %345 = vperm.xlu0 %344, %v339
        %v346 = vpop.permute.xlu0 %345
        %349 = vset.pattern.permute.xlu0 0
        %350 = vperm.xlu0 %349, %v340
        %v351 = vpop.permute.xlu0 %350
        %354 = vset.pattern.permute.xlu0 0
        %355 = vperm.xlu0 %354, %v341
        %v356 = vpop.permute.xlu0 %355
        %359 = vset.pattern.permute.xlu0 0
        %360 = vperm.xlu0 %359, %v342
        %v361 = vpop.permute.xlu0 %360
        %379 = vrot.lane.b32.xlu0 %v319, 111
        %v380 = vpop.permute.xlu0 %379
        %381 = vrot.lane.b32.xlu0 %v320, 111
        %v382 = vpop.permute.xlu0 %381
        %383 = vrot.lane.b32.xlu0 %v321, 111
        %v384 = vpop.permute.xlu0 %383
        %385 = vrot.lane.b32.xlu0 %v322, 111
        %v386 = vpop.permute.xlu0 %385
        %387 = vrot.lane.b32.xlu0 %v323, 111
        %v388 = vpop.permute.xlu0 %387
        %389 = vrot.lane.b32.xlu0 %v324, 111
        %v390 = vpop.permute.xlu0 %389
        %391 = vrot.lane.b32.xlu0 %v325, 111
        %v392 = vpop.permute.xlu0 %391
        %393 = vrot.lane.b32.xlu0 %v326, 111
        %v394 = vpop.permute.xlu0 %393
        %395 = vrot.lane.b32.xlu0 %v327, 111
        %v396 = vpop.permute.xlu0 %395
        %397 = vrot.lane.b32.xlu0 %v328, 111
        %v398 = vpop.permute.xlu0 %397
        %399 = vrot.lane.b32.xlu0 %v329, 111
        %v400 = vpop.permute.xlu0 %399
        %401 = vrot.lane.b32.xlu0 %v330, 111
        %v402 = vpop.permute.xlu0 %401
        %403 = vrot.lane.b32.xlu0 %v331, 111
        %v404 = vpop.permute.xlu0 %403
        %405 = vrot.lane.b32.xlu0 %v332, 111
        %v406 = vpop.permute.xlu0 %405
        %407 = vrot.lane.b32.xlu0 %v333, 111
        %v408 = vpop.permute.xlu0 %407
        %409 = vrot.lane.b32.xlu0 %v334, 111
        %v410 = vpop.permute.xlu0 %409
        %411 = vrot.lane.b32.xlu0 %v315, 111
        %v412 = vpop.permute.xlu0 %411
        %413 = vrot.lane.b32.xlu0 %v316, 111
        %v414 = vpop.permute.xlu0 %413
        %415 = vrot.lane.b32.xlu0 %v317, 111
        %v416 = vpop.permute.xlu0 %415
        %417 = vrot.lane.b32.xlu0 %v313, 111
        %v418 = vpop.permute.xlu0 %417
        %vm419 = vcmask 908288
        %v420 = vsel %vm419, %v380, %v382
        %v421 = vsel %vm419, %v382, %v384
        %v422 = vsel %vm419, %v384, %v386
        %v423 = vsel %vm419, %v388, %v390
        %v424 = vsel %vm419, %v390, %v392
        %v425 = vsel %vm419, %v392, %v394
        %v426 = vsel %vm419, %v396, %v398
        %v427 = vsel %vm419, %v398, %v400
        %v428 = vsel %vm419, %v400, %v402
        %v429 = vsel %vm419, %v404, %v406
        %v430 = vsel %vm419, %v406, %v408
        %v431 = vsel %vm419, %v408, %v410
        %v432 = vsel %vm419, %v412, %v414
        %v433 = vsel %vm419, %v414, %v416
        %v434 = vsel %vm419, %v416, %v418
        %vm447 = vcmask 293888
        %v449 = vsel %vm447, %v335, 0
        %v452 = vsel %vm447, %v336, 0
        %v455 = vsel %vm447, %v337, 0
        %v458 = vsel %vm447, %v338, 0
        %v460 = vsel %vm318, %v432, 0
        %v462 = vsel %vm318, %v433, 0
        %v464 = vsel %vm318, %v434, 0
        %466 = vmatprep.subr.mxu0 0.0
        %467 = vmatpush1.msra.mxu0 0.0
        %468 = vmatprep.subr.mxu0 0.0
        %469 = vmatpush1.msra.mxu0 0.0
        %470 = vmatprep.subr.mxu0 0.0
        %471 = vmatpush1.msra.mxu0 0.0
        %472 = vmatprep.subr.mxu0 0.0
        %473 = vmatpush1.msra.mxu0 0.0
        %474 = vmatprep.subr.mxu0 0.0
        %475 = vmatpush1.msra.mxu0 0.0
        %476 = vmatprep.subr.mxu0 0.0
        %477 = vmatpush1.msra.mxu0 0.0
        %478 = vmatprep.subr.mxu0 0.0
        %479 = vmatpush1.msra.mxu0 0.0
        %480 = vmatprep.subr.mxu0 0.0
        %481 = vmatpush1.msra.mxu0 0.0
        %482 = vmatprep.subr.mxu0 0.0
        %483 = vmatpush1.msra.mxu0 0.0
        %484 = vmatprep.subr.mxu0 0.0
        %485 = vmatpush1.msra.mxu0 0.0
        %486 = vmatprep.subr.mxu0 0.0
        %487 = vmatpush1.msra.mxu0 0.0
        %488 = vmatprep.subr.mxu0 %v462
        %489 = vmatpush1.msra.mxu0 %v460
        %490 = vmatprep.subr.mxu0 %v430
        %491 = vmatpush1.msra.mxu0 %v429
        %492 = vmatprep.subr.mxu0 %v427
        %493 = vmatpush1.msra.mxu0 %v426
        %494 = vmatprep.subr.mxu0 %v424
        %495 = vmatpush1.msra.mxu0 %v423
        %496 = vmatprep.subr.mxu0 %v421
        %497 = vmatpush1.msra.mxu0 %v420
        %498 = vmatprep.subr.mxu0 0.0
        %499 = vmatpush2.msra.mxu0 0.0
        %500 = vmatprep.subr.mxu0 0.0
        %501 = vmatpush2.msra.mxu0 0.0
        %502 = vmatprep.subr.mxu0 0.0
        %503 = vmatpush2.msra.mxu0 0.0
        %504 = vmatprep.subr.mxu0 0.0
        %505 = vmatpush2.msra.mxu0 0.0
        %506 = vmatprep.subr.mxu0 0.0
        %507 = vmatpush2.msra.mxu0 0.0
        %508 = vmatprep.subr.mxu0 0.0
        %509 = vmatpush2.msra.mxu0 0.0
        %510 = vmatprep.subr.mxu0 0.0
        %511 = vmatpush2.msra.mxu0 0.0
        %512 = vmatprep.subr.mxu0 0.0
        %513 = vmatpush2.msra.mxu0 0.0
        %514 = vmatprep.subr.mxu0 0.0
        %515 = vmatpush2.msra.mxu0 0.0
        %516 = vmatprep.subr.mxu0 0.0
        %517 = vmatpush2.msra.mxu0 0.0
        %518 = vmatprep.subr.mxu0 0.0
        %519 = vmatpush2.msra.mxu0 0.0
        %520 = vmatprep.subr.mxu0 0.0
        %521 = vmatpush2.msra.mxu0 0.0
        %522 = vmatprep.subr.mxu0 0.0
        %523 = vmatpush2.msra.mxu0 0.0
        %524 = vmatprep.subr.mxu0 0.0
        %525 = vmatpush2.msra.mxu0 0.0
        %526 = vmatprep.subr.mxu0 0.0
        %527 = vmatpush2.msra.mxu0 0.0
        %528 = vmatprep.subr.mxu0 0.0
        %529 = vmatpush2.msra.mxu0 0.0
        %530 = vmatprep.mubr.f32.mxu0 0.0
        %531 = vmatmul.mubr.f32.gmra.mxu0 %v449
        %v532 = vpop.f32.mrf.mxu0
        %v533 = vadd.f32 %v346, %v532
        %v534 = vpop.f32.mrf.mxu0
        %v535 = vadd.f32 %v346, %v534
        %536 = vmatprep.mubr.f32.mxu0 0.0
        %537 = vmatmul.mubr.f32.gmra.mxu0 %v452
        %v538 = vpop.f32.mrf.mxu0
        %v539 = vadd.f32 %v351, %v538
        %v540 = vpop.f32.mrf.mxu0
        %v541 = vadd.f32 %v351, %v540
        %542 = vmatprep.mubr.f32.mxu0 0.0
        %543 = vmatmul.mubr.f32.gmra.mxu0 %v455
        %v544 = vpop.f32.mrf.mxu0
        %v545 = vadd.f32 %v356, %v544
        %v546 = vpop.f32.mrf.mxu0
        %v547 = vadd.f32 %v356, %v546
        %548 = vmatprep.mubr.f32.mxu0 0.0
        %549 = vmatmul.mubr.f32.gmra.mxu0 %v458
        %v550 = vpop.f32.mrf.mxu0
        %v551 = vadd.f32 %v361, %v550
        %v552 = vpop.f32.mrf.mxu0
        %v553 = vadd.f32 %v361, %v552
        %554 = vdwg.mxu0
        %555 = vmatprep.subr.mxu0 0.0
        %556 = vmatpush1.msra.mxu0 0.0
        %557 = vmatprep.subr.mxu0 0.0
        %558 = vmatpush1.msra.mxu0 0.0
        %559 = vmatprep.subr.mxu0 0.0
        %560 = vmatpush1.msra.mxu0 0.0
        %561 = vmatprep.subr.mxu0 0.0
        %562 = vmatpush1.msra.mxu0 0.0
        %563 = vmatprep.subr.mxu0 0.0
        %564 = vmatpush1.msra.mxu0 0.0
        %565 = vmatprep.subr.mxu0 0.0
        %566 = vmatpush1.msra.mxu0 0.0
        %567 = vmatprep.subr.mxu0 0.0
        %568 = vmatpush1.msra.mxu0 0.0
        %569 = vmatprep.subr.mxu0 0.0
        %570 = vmatpush1.msra.mxu0 0.0
        %571 = vmatprep.subr.mxu0 0.0
        %572 = vmatpush1.msra.mxu0 0.0
        %573 = vmatprep.subr.mxu0 0.0
        %574 = vmatpush1.msra.mxu0 0.0
        %575 = vmatprep.subr.mxu0 0.0
        %576 = vmatpush1.msra.mxu0 0.0
        %577 = vmatprep.subr.mxu0 0.0
        %578 = vmatpush1.msra.mxu0 %v464
        %579 = vmatprep.subr.mxu0 0.0
        %580 = vmatpush1.msra.mxu0 %v431
        %581 = vmatprep.subr.mxu0 0.0
        %582 = vmatpush1.msra.mxu0 %v428
        %583 = vmatprep.subr.mxu0 0.0
        %584 = vmatpush1.msra.mxu0 %v425
        %585 = vmatprep.subr.mxu0 0.0
        %586 = vmatpush1.msra.mxu0 %v422
        %587 = vmatprep.subr.mxu0 0.0
        %588 = vmatpush2.msra.mxu0 0.0
        %589 = vmatprep.subr.mxu0 0.0
        %590 = vmatpush2.msra.mxu0 0.0
        %591 = vmatprep.subr.mxu0 0.0
        %592 = vmatpush2.msra.mxu0 0.0
        %593 = vmatprep.subr.mxu0 0.0
        %594 = vmatpush2.msra.mxu0 0.0
        %595 = vmatprep.subr.mxu0 0.0
        %596 = vmatpush2.msra.mxu0 0.0
        %597 = vmatprep.subr.mxu0 0.0
        %598 = vmatpush2.msra.mxu0 0.0
        %599 = vmatprep.subr.mxu0 0.0
        %600 = vmatpush2.msra.mxu0 0.0
        %601 = vmatprep.subr.mxu0 0.0
        %602 = vmatpush2.msra.mxu0 0.0
        %603 = vmatprep.subr.mxu0 0.0
        %604 = vmatpush2.msra.mxu0 0.0
        %605 = vmatprep.subr.mxu0 0.0
        %606 = vmatpush2.msra.mxu0 0.0
        %607 = vmatprep.subr.mxu0 0.0
        %608 = vmatpush2.msra.mxu0 0.0
        %609 = vmatprep.subr.mxu0 0.0
        %610 = vmatpush2.msra.mxu0 0.0
        %611 = vmatprep.subr.mxu0 0.0
        %612 = vmatpush2.msra.mxu0 0.0
        %613 = vmatprep.subr.mxu0 0.0
        %614 = vmatpush2.msra.mxu0 0.0
        %615 = vmatprep.subr.mxu0 0.0
        %616 = vmatpush2.msra.mxu0 0.0
        %617 = vmatprep.subr.mxu0 0.0
        %618 = vmatpush2.msra.mxu0 0.0
        %619 = vmatprep.mubr.f32.mxu0 0.0
        %620 = vmatmul.mubr.f32.gmra.mxu0 %v449
        %v621 = vpop.f32.mrf.mxu0
        %v622 = vadd.f32 %v346, %v621
        %v623 = vpop.f32.mrf.mxu0
        %624 = vmatprep.mubr.f32.mxu0 0.0
        %625 = vmatmul.mubr.f32.gmra.mxu0 %v452
        %v626 = vpop.f32.mrf.mxu0
        %v627 = vadd.f32 %v351, %v626
        %v628 = vpop.f32.mrf.mxu0
        %629 = vmatprep.mubr.f32.mxu0 0.0
        %630 = vmatmul.mubr.f32.gmra.mxu0 %v455
        %v631 = vpop.f32.mrf.mxu0
        %v632 = vadd.f32 %v356, %v631
        %v633 = vpop.f32.mrf.mxu0
        %634 = vmatprep.mubr.f32.mxu0 0.0
        %635 = vmatmul.mubr.f32.gmra.mxu0 %v458
        %v636 = vpop.f32.mrf.mxu0
        %v637 = vadd.f32 %v361, %v636
        %v638 = vpop.f32.mrf.mxu0
        %639 = vdwg.mxu0
        %v640 = vmax.f32 %v533, 0.0
        %v641 = vmax.f32 %v535, 0.0
        %v642 = vmax.f32 %v622, 0.0
        %v643 = vmax.f32 %v539, 0.0
        %v644 = vmax.f32 %v541, 0.0
        %v645 = vmax.f32 %v627, 0.0
        %v646 = vmax.f32 %v545, 0.0
        %v647 = vmax.f32 %v547, 0.0
        %v648 = vmax.f32 %v632, 0.0
        %v649 = vmax.f32 %v551, 0.0
        %v650 = vmax.f32 %v553, 0.0
        %v651 = vmax.f32 %v637, 0.0
        %652 = vst [vmem:[%s178] sm:$0xff] %v640
        %653 = vst [vmem:[%s178 + $0x8] sm:$0xff] %v641
        %654 = vst [vmem:[%s178 + $0x10] sm:$0xff] %v642
        %655 = vst [vmem:[%s178 + $0x18] sm:$0xff] %v643
        %656 = vst [vmem:[%s178 + $0x20] sm:$0xff] %v644
        %657 = vst [vmem:[%s178 + $0x28] sm:$0xff] %v645
        %658 = vst [vmem:[%s178 + $0x30] sm:$0xff] %v646
        %659 = vst [vmem:[%s178 + $0x38] sm:$0xff] %v647
        %660 = vst [vmem:[%s178 + $0x40] sm:$0xff] %v648
        %661 = vst [vmem:[%s178 + $0x48] sm:$0xff] %v649
        %662 = vst [vmem:[%s178 + $0x50] sm:$0xff] %v650
        %663 = vst [vmem:[%s178 + $0x58] sm:$0xff] %v651
        %s664 = sand.u32 %s94, 1
        %s665 = scalar_lea.sflag [#allocation4], %s664
        %s666 = sand.u32 %s94, 1
        %s667 = smul.addr %s666, 96
        %s668 = scalar_lea.vmem [#allocation5], %s667
        // Predicated region
        $region37: #{tpu_custom_call.1} parent=31 // pred_check
          %p669 = pneg %p104
        $region38: #{tpu_custom_call.1} parent=31 // pred_check_branch
          %671 = sbr.rel (%p669) target = $region40
        $region39: #{tpu_custom_call.1} parent=31 // pred_region
          %s673 = ssub.s32 1536, 1536
          %674 = vsyncadd %s665, %s673
          %s675 = smul.addr %s18, 12
          %s676 = smul.addr %s675, 128
          %s677 = scalar_lea.hbm %s3, %s676
          %s678 = sshll.u32 %s668, 4
          %s679 = int_to_ptr.vmem [resolvable:$true] %s678
          %684 = dma.vmem_to_hbm [thread:$0]  %s679, 1536, %s677, %s665, 384, 384, 24
        $region40: #{tpu_custom_call.1} parent=31 // pred_fallthru
          _
      $region32: #{tpu_custom_call.1} parent=5 // pred_fallthru
        _
      %p685 = scmp.le.s32.totalorder 2, %s13
      // Predicated region
      $region41: #{tpu_custom_call.1} parent=5 // pred_check
        %p686 = pneg %p685
      $region42: #{tpu_custom_call.1} parent=5 // pred_check_branch
        %688 = sbr.rel (%p686) target = $region44
      $region43: #{tpu_custom_call.1} parent=5 // pred_region
        %s689 = ssub.s32 %s13, 2
        // Predicated region
        $region45: #{tpu_custom_call.1} parent=43 // pred_check
          %p690 = pneg %p110
        $region46: #{tpu_custom_call.1} parent=43 // pred_check_branch
          %692 = sbr.rel (%p690) target = $region48
        $region47: #{tpu_custom_call.1} parent=43 // pred_region
          %s693 = sand.u32 %s95, 1
          %s694 = scalar_lea.sflag [#allocation4], %s693
          %s695 = sand.u32 %s95, 1
          %s696 = smul.addr %s695, 96
          %s697 = scalar_lea.vmem [#allocation5], %s696
          %698 = dma.done %s694, 1536
        $region48: #{tpu_custom_call.1} parent=43 // pred_fallthru
          _
      $region44: #{tpu_custom_call.1} parent=5 // pred_fallthru
        _
    $region6: #{tpu_custom_call.1} parent=1 // loop_footer
      %s17 = sadd.s32 1, %s13
    $region7: #{tpu_custom_call.1} parent=1 // loop_footer_branch
      %12 = sbr.rel target = $region3
    $region8: #{tpu_custom_call.1} parent=1 // loop_exit
      _
    %699 = vsyncpa [#allocation3], 1
    %s700 = scalar_lea.sflag [#allocation3], 1
    %701 = vsyncpa %s700, 1
    %702 = vsyncpa [#allocation4], 1
    %s703 = scalar_lea.sflag [#allocation4], 1
    %704 = vsyncpa %s703, 1

</llo_original>
